<compile_context>
chip_gen: v6e
topology: v6e:2x2x1
jax: 0.10.0
libtpu: 0.0.40
codegen_flags: <defaults>
</compile_context>

<pallas_src>
import functools
import math

import jax
import jax.numpy as jnp
from jax.experimental import pallas as pl
from jax.experimental.pallas import tpu as pltpu


def _attblock_kernel(x_ref, wf_ref, bf_ref, out_ref, natt_ref, cla_ref,
                     xcm_ref, zbm_ref, *, n_out, tb, t, activation):
    # x_ref:    (tb, n_in, T)     native PyTorch layout block
    # wf_ref:   (2*n_out, n_in)   fused [w_att; w_cla]
    # bf_ref:   (2*n_out, 1)      fused [b_att; b_cla]
    # out_ref:  (tb, n_out)
    # natt_ref: (tb, n_out, T)
    # cla_ref:  (tb, n_out, T)
    # xcm_ref:  (n_in, tb*T)      VMEM scratch, channels-major slab
    # zbm_ref:  (tb, 2*n_out, T)  VMEM scratch, batch-major conv outputs (f32)

    # (1) Pack the batch tile channels-major.  With T a multiple of 128 each
    # copy moves whole (8,128) tiles (no lane/sublane shuffles, no HBM trip).
    for b in range(tb):
        xcm_ref[:, b * t:(b + 1) * t] = x_ref[b]

    # (2) Both 1x1 convs as a single MXU matmul, f32 accumulation.
    z = jnp.dot(wf_ref[...], xcm_ref[...], preferred_element_type=jnp.float32)
    z = z + bf_ref[...]                              # (2*n_out, tb*T)

    # (3) Re-tile to batch-major; each batch's slab is a lane-group-aligned
    # slice of z, so again whole-tile copies.
    for b in range(tb):
        zbm_ref[b, :, :] = z[:, b * t:(b + 1) * t]

    zb = zbm_ref[...]                                # (tb, 2*n_out, T), f32

    # (4) Attention branch.  The clamp bounds exp() to [e^-10, e^10], so no
    # max-subtraction is needed for stability in f32.
    att = jnp.clip(zb[:, :n_out, :], -10.0, 10.0)
    e = jnp.exp(att)
    denom = jnp.sum(e, axis=-1, keepdims=True)       # (tb, n_out, 1)
    norm_att = e * (1.0 / denom)                     # exact divide (tiny)

    # (5) Classification branch.
    cla = zb[:, n_out:, :]
    if activation == 'sigmoid':
        cla = jax.nn.sigmoid(cla)
    # activation == 'linear' -> identity

    # (6) Stores, already in the PyTorch layouts (lane-dense, T lanes).
    natt_ref[...] = norm_att.astype(natt_ref.dtype)
    cla_ref[...] = cla.astype(cla_ref.dtype)
    out_ref[...] = jnp.sum(norm_att * cla, axis=-1).astype(out_ref.dtype)


def _round_up(v, m):
    return ((v + m - 1) // m) * m


def _choose_batch_tile(B, tb_max):
    assert tb_max >= 8 and tb_max % 8 == 0
    if B > tb_max:
        return tb_max
    if B >= 16:
        # >= 2 grid steps so the "parallel" batch axis can shard across the
        # two TensorCores of a v7x chip; keep the tile a multiple of 8.
        return min(tb_max, _round_up((B + 1) // 2, 8))
    return B


def att_block_forward(x, w_att, b_att, w_cla, b_cla, *, activation='linear',
                      tb_max=256):
    """x: (B, n_in, T); w_*: (n_out, n_in); b_*: (n_out,)."""
    assert activation in ('linear', 'sigmoid')
    B, n_in, T = x.shape
    n_out = w_att.shape[0]

    tb = _choose_batch_tile(B, tb_max)
    grid = (pl.cdiv(B, tb),)

    # Tiny fused weight/bias tensors (the only wrapper-side data prep).
    wf = jnp.concatenate([w_att, w_cla], axis=0)                  # (2*n_out, n_in)
    bf = jnp.concatenate([b_att, b_cla]).reshape(2 * n_out, 1).astype(jnp.float32)

    kernel = functools.partial(_attblock_kernel, n_out=n_out, tb=tb, t=T,
                               activation=activation)

    out, norm_att, cla = pl.pallas_call(
        kernel,
        out_shape=(
            jax.ShapeDtypeStruct((B, n_out), x.dtype),
            jax.ShapeDtypeStruct((B, n_out, T), x.dtype),
            jax.ShapeDtypeStruct((B, n_out, T), x.dtype),
        ),
        grid_spec=pltpu.PrefetchScalarGridSpec(
            num_scalar_prefetch=0,
            grid=grid,
            in_specs=[
                pl.BlockSpec((tb, n_in, T), lambda i: (i, 0, 0)),
                pl.BlockSpec((2 * n_out, n_in), lambda i: (0, 0)),
                pl.BlockSpec((2 * n_out, 1), lambda i: (0, 0)),
            ],
            out_specs=[
                pl.BlockSpec((tb, n_out), lambda i: (i, 0)),
                pl.BlockSpec((tb, n_out, T), lambda i: (i, 0, 0)),
                pl.BlockSpec((tb, n_out, T), lambda i: (i, 0, 0)),
            ],
            scratch_shapes=[
                pltpu.VMEM((n_in, tb * T), x.dtype),
                pltpu.VMEM((tb, 2 * n_out, T), jnp.float32),
            ],
        ),
        compiler_params=pltpu.CompilerParams(
            dimension_semantics=("parallel",),
            vmem_limit_bytes=48 * 1024 * 1024),
    )(x, wf, bf)

    return out, norm_att, cla


def _xavier_uniform(key, n_out, n_in):
    # Conv1d(kernel_size=1) weight (n_out, n_in, 1); fan_in=n_in, fan_out=n_out.
    limit = math.sqrt(6.0 / (n_in + n_out))
    return jax.random.uniform(key, (n_out, n_in), jnp.float32, -limit, limit)


def _reference(x, w_att, b_att, w_cla, b_cla, activation='linear'):
    att = jnp.einsum('oi,bit->bot', w_att, x,
                     precision='highest') + b_att[None, :, None]
    att = jnp.clip(att, -10.0, 10.0)
    norm_att = jax.nn.softmax(att, axis=-1)
    cla = jnp.einsum('oi,bit->bot', w_cla, x,
                     precision='highest') + b_cla[None, :, None]
    if activation == 'sigmoid':
        cla = jax.nn.sigmoid(cla)
    out = jnp.sum(norm_att * cla, axis=2)
    return out, norm_att, cla


def _run_case(key, B, n_in, n_out, T, activation, tb_max):
    kx, ka, kc, kba, kbc = jax.random.split(key, 5)
    x = jax.random.normal(kx, (B, n_in, T), jnp.float32)
    w_att = _xavier_uniform(ka, n_out, n_in)
    w_cla = _xavier_uniform(kc, n_out, n_in)
    b_att = 0.1 * jax.random.normal(kba, (n_out,), jnp.float32)
    b_cla = 0.1 * jax.random.normal(kbc, (n_out,), jnp.float32)

    out, natt, cla = att_block_forward(x, w_att, b_att, w_cla, b_cla,
                                       activation=activation, tb_max=tb_max)
    jax.block_until_ready((out, natt, cla))

    ro, rn, rc = _reference(x, w_att, b_att, w_cla, b_cla, activation)
    assert jnp.allclose(out, ro, atol=1e-4, rtol=1e-4), f"out mismatch B={B}"
    assert jnp.allclose(natt, rn, atol=1e-4, rtol=1e-4), f"natt mismatch B={B}"
    assert jnp.allclose(cla, rc, atol=1e-4, rtol=1e-4), f"cla mismatch B={B}"


if __name__ == "__main__":
    n_in, n_out, T = 32, 8, 128
    key = jax.random.PRNGKey(0)
    k1, k2, k3, k4 = jax.random.split(key, 4)

    # single grid step, linear activation
    _run_case(k1, B=2, n_in=n_in, n_out=n_out, T=T,
              activation='linear', tb_max=256)
    # single grid step, sigmoid activation
    _run_case(k2, B=2, n_in=n_in, n_out=n_out, T=T,
              activation='sigmoid', tb_max=256)
    # multi-step grid with a partial tail block (B=13, tile=8)
    _run_case(k3, B=13, n_in=n_in, n_out=n_out, T=T,
              activation='sigmoid', tb_max=8)
    # batch large enough to auto-split into 2 grid steps (tb=16, v7x-friendly)
    _run_case(k4, B=32, n_in=n_in, n_out=n_out, T=T,
              activation='sigmoid', tb_max=256)

    print("KERNEL_OK")
</pallas_src>

<mosaic_0001>
module attributes {stable_mosaic.version = 11 : i64} {
  func.func @_attblock_kernel(%arg0: i32, %arg1: memref<2x32x128xf32, #tpu.memory_space<vmem>>, %arg2: memref<16x32xf32, #tpu.memory_space<vmem>>, %arg3: memref<16x1xf32, #tpu.memory_space<vmem>>, %arg4: memref<2x8xf32, #tpu.memory_space<vmem>>, %arg5: memref<2x8x128xf32, #tpu.memory_space<vmem>>, %arg6: memref<2x8x128xf32, #tpu.memory_space<vmem>>, %arg7: memref<32x256xf32, #tpu.memory_space<vmem>>, %arg8: memref<2x16x128xf32, #tpu.memory_space<vmem>>) attributes {dimension_semantics = [#tpu.dimension_semantics<parallel>], iteration_bounds = array<i64: 1>, scalar_prefetch = 0 : i64, scratch_operands = 2 : i64, tpu.core_type = #tpu.core_type<tc>, window_params = [{transform_indices = @transform_0, window_bounds = array<i64: 2, 32, 128>}, {pipeline_mode = #tpu.pipeline_mode<synchronous>, transform_indices = @transform_1, window_bounds = array<i64: 16, 32>}, {pipeline_mode = #tpu.pipeline_mode<synchronous>, transform_indices = @transform_2, window_bounds = array<i64: 16, 1>}, {transform_indices = @transform_3, window_bounds = array<i64: 2, 8>}, {transform_indices = @transform_4, window_bounds = array<i64: 2, 8, 128>}, {transform_indices = @transform_5, window_bounds = array<i64: 2, 8, 128>}]} {
    %c0 = arith.constant 0 : index
    %c0_0 = arith.constant 0 : index
    %c0_1 = arith.constant 0 : index
    %0 = vector.load %arg1[%c0, %c0_0, %c0_1] : memref<2x32x128xf32, #tpu.memory_space<vmem>>, vector<1x32x128xf32>
    %1 = vector.shape_cast %0 : vector<1x32x128xf32> to vector<32x128xf32>
    %c0_2 = arith.constant 0 : index
    %c0_3 = arith.constant 0 : index
    %2 = vector.load %arg7[%c0_2, %c0_3] : memref<32x256xf32, #tpu.memory_space<vmem>>, vector<32x128xf32>
    tpu.vector_store %arg7[%c0_2, %c0_3], %1 {strides = array<i32>} : memref<32x256xf32, #tpu.memory_space<vmem>>, vector<32x128xf32>,
    %c1 = arith.constant 1 : index
    %c0_4 = arith.constant 0 : index
    %c0_5 = arith.constant 0 : index
    %3 = vector.load %arg1[%c1, %c0_4, %c0_5] : memref<2x32x128xf32, #tpu.memory_space<vmem>>, vector<1x32x128xf32>
    %4 = vector.shape_cast %3 : vector<1x32x128xf32> to vector<32x128xf32>
    %c0_6 = arith.constant 0 : index
    %c128 = arith.constant 128 : index
    %5 = vector.load %arg7[%c0_6, %c128] : memref<32x256xf32, #tpu.memory_space<vmem>>, vector<32x128xf32>
    tpu.vector_store %arg7[%c0_6, %c128], %4 {strides = array<i32>} : memref<32x256xf32, #tpu.memory_space<vmem>>, vector<32x128xf32>,
    %c0_7 = arith.constant 0 : index
    %c0_8 = arith.constant 0 : index
    %6 = vector.load %arg2[%c0_7, %c0_8] : memref<16x32xf32, #tpu.memory_space<vmem>>, vector<16x32xf32>
    %c0_9 = arith.constant 0 : index
    %c0_10 = arith.constant 0 : index
    %7 = vector.load %arg7[%c0_9, %c0_10] : memref<32x256xf32, #tpu.memory_space<vmem>>, vector<32x256xf32>
    %cst = arith.constant dense<0.000000e+00> : vector<16x256xf32>
    %8 = tpu.matmul %6, %7, %cst {dimension_numbers = #tpu.dot_dimension_numbers<[1], [0], [0], [1], [0, 0, 1, 1], [], []>} : vector<16x32xf32>, vector<32x256xf32>, vector<16x256xf32> -> vector<16x256xf32>
    %c0_11 = arith.constant 0 : index
    %c0_12 = arith.constant 0 : index
    %9 = vector.load %arg3[%c0_11, %c0_12] : memref<16x1xf32, #tpu.memory_space<vmem>>, vector<16x1xf32>
    %10 = vector.broadcast %9 : vector<16x1xf32> to vector<16x256xf32>
    %11 = arith.addf %8, %10 : vector<16x256xf32>
    %12 = vector.extract_strided_slice %11 {offsets = [0, 0], sizes = [16, 128], strides = [1, 1]} : vector<16x256xf32> to vector<16x128xf32>
    %c0_13 = arith.constant 0 : index
    %c0_14 = arith.constant 0 : index
    %c0_15 = arith.constant 0 : index
    %13 = vector.load %arg8[%c0_13, %c0_14, %c0_15] : memref<2x16x128xf32, #tpu.memory_space<vmem>>, vector<1x16x128xf32>
    %14 = vector.shape_cast %13 : vector<1x16x128xf32> to vector<16x128xf32>
    %15 = vector.shape_cast %12 : vector<16x128xf32> to vector<1x16x128xf32>
    tpu.vector_store %arg8[%c0_13, %c0_14, %c0_15], %15 {strides = array<i32>} : memref<2x16x128xf32, #tpu.memory_space<vmem>>, vector<1x16x128xf32>,
    %16 = vector.extract_strided_slice %11 {offsets = [0, 128], sizes = [16, 128], strides = [1, 1]} : vector<16x256xf32> to vector<16x128xf32>
    %c1_16 = arith.constant 1 : index
    %c0_17 = arith.constant 0 : index
    %c0_18 = arith.constant 0 : index
    %17 = vector.load %arg8[%c1_16, %c0_17, %c0_18] : memref<2x16x128xf32, #tpu.memory_space<vmem>>, vector<1x16x128xf32>
    %18 = vector.shape_cast %17 : vector<1x16x128xf32> to vector<16x128xf32>
    %19 = vector.shape_cast %16 : vector<16x128xf32> to vector<1x16x128xf32>
    tpu.vector_store %arg8[%c1_16, %c0_17, %c0_18], %19 {strides = array<i32>} : memref<2x16x128xf32, #tpu.memory_space<vmem>>, vector<1x16x128xf32>,
    %c0_19 = arith.constant 0 : index
    %c0_20 = arith.constant 0 : index
    %c0_21 = arith.constant 0 : index
    %20 = vector.load %arg8[%c0_19, %c0_20, %c0_21] : memref<2x16x128xf32, #tpu.memory_space<vmem>>, vector<2x16x128xf32>
    %21 = vector.extract_strided_slice %20 {offsets = [0, 0, 0], sizes = [2, 8, 128], strides = [1, 1, 1]} : vector<2x16x128xf32> to vector<2x8x128xf32>
    %cst_22 = arith.constant -1.000000e+01 : f32
    %cst_23 = arith.constant 1.000000e+01 : f32
    %22 = vector.broadcast %cst_22 : f32 to vector<2x8x128xf32>
    %23 = arith.maximumf %22, %21 : vector<2x8x128xf32>
    %24 = vector.broadcast %cst_23 : f32 to vector<2x8x128xf32>
    %25 = arith.minimumf %24, %23 : vector<2x8x128xf32>
    %26 = math.exp %25 : vector<2x8x128xf32>
    %cst_24 = arith.constant dense<0.000000e+00> : vector<2x8xf32>
    %27 = vector.multi_reduction <add>, %26, %cst_24 [2] : vector<2x8x128xf32> to vector<2x8xf32>
    %28 = vector.shape_cast %27 : vector<2x8xf32> to vector<2x8x1xf32>
    %cst_25 = arith.constant 1.000000e+00 : f32
    %29 = vector.broadcast %cst_25 : f32 to vector<2x8x1xf32>
    %30 = arith.divf %29, %28 : vector<2x8x1xf32>
    %31 = vector.broadcast %30 : vector<2x8x1xf32> to vector<2x8x128xf32>
    %32 = arith.mulf %26, %31 : vector<2x8x128xf32>
    %33 = vector.extract_strided_slice %20 {offsets = [0, 8, 0], sizes = [2, 8, 128], strides = [1, 1, 1]} : vector<2x16x128xf32> to vector<2x8x128xf32>
    %c0_26 = arith.constant 0 : index
    %c0_27 = arith.constant 0 : index
    %c0_28 = arith.constant 0 : index
    %34 = vector.load %arg5[%c0_26, %c0_27, %c0_28] : memref<2x8x128xf32, #tpu.memory_space<vmem>>, vector<2x8x128xf32>
    tpu.vector_store %arg5[%c0_26, %c0_27, %c0_28], %32 {strides = array<i32>} : memref<2x8x128xf32, #tpu.memory_space<vmem>>, vector<2x8x128xf32>,
    %c0_29 = arith.constant 0 : index
    %c0_30 = arith.constant 0 : index
    %c0_31 = arith.constant 0 : index
    %35 = vector.load %arg6[%c0_29, %c0_30, %c0_31] : memref<2x8x128xf32, #tpu.memory_space<vmem>>, vector<2x8x128xf32>
    tpu.vector_store %arg6[%c0_29, %c0_30, %c0_31], %33 {strides = array<i32>} : memref<2x8x128xf32, #tpu.memory_space<vmem>>, vector<2x8x128xf32>,
    %36 = arith.mulf %32, %33 : vector<2x8x128xf32>
    %cst_32 = arith.constant dense<0.000000e+00> : vector<2x8xf32>
    %37 = vector.multi_reduction <add>, %36, %cst_32 [2] : vector<2x8x128xf32> to vector<2x8xf32>
    %c0_33 = arith.constant 0 : index
    %c0_34 = arith.constant 0 : index
    %38 = vector.load %arg4[%c0_33, %c0_34] : memref<2x8xf32, #tpu.memory_space<vmem>>, vector<2x8xf32>
    tpu.vector_store %arg4[%c0_33, %c0_34], %37 {strides = array<i32>} : memref<2x8xf32, #tpu.memory_space<vmem>>, vector<2x8xf32>,
    return
  }
  func.func @transform_0(%arg0: i32) -> (i32, i32, i32) {
    %c0_i32 = arith.constant 0 : i32
    %c0_i32_0 = arith.constant 0 : i32
    %c0_i32_1 = arith.constant 0 : i32
    return %arg0, %c0_i32, %c0_i32_0 : i32, i32, i32
  }
  func.func @transform_1(%arg0: i32) -> (i32, i32) {
    %c0_i32 = arith.constant 0 : i32
    %c0_i32_0 = arith.constant 0 : i32
    %c0_i32_1 = arith.constant 0 : i32
    return %c0_i32, %c0_i32_0 : i32, i32
  }
  func.func @transform_2(%arg0: i32) -> (i32, i32) {
    %c0_i32 = arith.constant 0 : i32
    %c0_i32_0 = arith.constant 0 : i32
    %c0_i32_1 = arith.constant 0 : i32
    return %c0_i32, %c0_i32_0 : i32, i32
  }
  func.func @transform_3(%arg0: i32) -> (i32, i32) {
    %c0_i32 = arith.constant 0 : i32
    %c0_i32_0 = arith.constant 0 : i32
    return %arg0, %c0_i32 : i32, i32
  }
  func.func @transform_4(%arg0: i32) -> (i32, i32, i32) {
    %c0_i32 = arith.constant 0 : i32
    %c0_i32_0 = arith.constant 0 : i32
    %c0_i32_1 = arith.constant 0 : i32
    return %arg0, %c0_i32, %c0_i32_0 : i32, i32, i32
  }
  func.func @transform_5(%arg0: i32) -> (i32, i32, i32) {
    %c0_i32 = arith.constant 0 : i32
    %c0_i32_0 = arith.constant 0 : i32
    %c0_i32_1 = arith.constant 0 : i32
    return %arg0, %c0_i32, %c0_i32_0 : i32, i32, i32
  }
}

</mosaic_0001>

<llo_original>
// kernel: tpu_custom_call.1
$region0: #{tpu_custom_call.1}
  #allocation0 [shape = 'u32[]', space=smem, size = 0x4, offset = 0x4, fixed_abs, tag = 'smem constant byte address 0x4 - core index']
  #allocation1 [shape = 'u32[144,128]{1,0:T(1,128)}', space=vmem, size = 0x12000, scoped, tag = 'internal scratch']
  #allocation2 [shape = 'f32[32,256]{1,0:T(8,128)}', space=vmem, size = 0x8000, scoped, tag = 'scratch operand']
  #allocation3 [shape = 'f32[2,16,128]{2,1,0:T(8,128)}', space=vmem, size = 0x4000, scoped, tag = 'scratch operand']
  %s0 = inlined_call_operand.hbm [shape: f32[2,32,128], index: 0, kind: input, shape index: {}]
  %s1 = inlined_call_operand.vmem [shape: f32[16,32], index: 1, kind: input, shape index: {}]
  %s2 = inlined_call_operand.vmem [shape: f32[16,1], index: 2, kind: input, shape index: {}]
  %s3 = inlined_call_operand.hbm [shape: f32[2,8], index: 3, kind: output, shape index: {0}]
  %s4 = inlined_call_operand.hbm [shape: f32[2,8,128], index: 4, kind: output, shape index: {1}]
  %s5 = inlined_call_operand.hbm [shape: f32[2,8,128], index: 5, kind: output, shape index: {2}]
  %6 = xla_tuple %s3, %s4, %s5
  %s7 = sld [smem:[#allocation0]]
  $region42: #{tpu_custom_call.1} parent=0
    _
  %s9 = ssub.s32 1, %s7
  %s10 = scalar_select 0, %s9, %s7
  $region1: #{tpu_custom_call.1} parent=0
    #allocation4 [shape = 'u8[32768]{0}', space=vmem, size = 0x8000, scoped, tag = 'input window, operand 0, single buffered']
    #allocation5 [shape = 's32[1]{0}', space=sflag, size = 0x4, scoped, tag = 'scoped memory for tpu_custom_call.1']
    #allocation6 [shape = 's32[1]{0}', space=sflag, size = 0x4, scoped, tag = 'scoped memory for tpu_custom_call.1']
    #allocation7 [shape = 'u8[1024]{0}', space=vmem, size = 0x400, scoped, tag = 'output window, operand 0, single buffered']
    #allocation8 [shape = 'u8[8192]{0}', space=vmem, size = 0x2000, scoped, tag = 'output window, operand 1, single buffered']
    #allocation9 [shape = 's32[1]{0}', space=sflag, size = 0x4, scoped, tag = 'scoped memory for tpu_custom_call.1']
    #allocation10 [shape = 'u8[8192]{0}', space=vmem, size = 0x2000, scoped, tag = 'output window, operand 2, single buffered']
    %11 = vsyncpa [#allocation5], 0
    %12 = vsyncpa [#allocation6], 0
    %13 = vsyncpa [#allocation9], 0
    // Predicated region
    $region2: #{tpu_custom_call.1} parent=1 // pred_check
      _
    $region3: #{tpu_custom_call.1} parent=1 // pred_check_branch
      %15 = sbr.rel (0) target = $region5
    $region4: #{tpu_custom_call.1} parent=1 // pred_region
      %s17 = ssub.s32 1024, 1024
      %18 = vsyncadd [#allocation5], %s17
      %s19 = sshll.u32 [#allocation4], 4
      %s20 = int_to_ptr.vmem [resolvable:$true] %s19
      %25 = dma.hbm_to_vmem [thread:$0]  %s0, 1024, %s20, [#allocation5], 128, 128, 8
    $region5: #{tpu_custom_call.1} parent=1 // pred_fallthru
      _
    // Predicated region
    $region6: #{tpu_custom_call.1} parent=1 // pred_check
      _
    $region7: #{tpu_custom_call.1} parent=1 // pred_check_branch
      %27 = sbr.rel (0) target = $region9
    $region8: #{tpu_custom_call.1} parent=1 // pred_region
      _
    $region9: #{tpu_custom_call.1} parent=1 // pred_fallthru
      _
    // Predicated region
    $region10: #{tpu_custom_call.1} parent=1 // pred_check
      _
    $region11: #{tpu_custom_call.1} parent=1 // pred_check_branch
      %29 = sbr.rel (0) target = $region13
    $region12: #{tpu_custom_call.1} parent=1 // pred_region
      _
    $region13: #{tpu_custom_call.1} parent=1 // pred_fallthru
      _
    // Predicated region
    $region14: #{tpu_custom_call.1} parent=1 // pred_check
      _
    $region15: #{tpu_custom_call.1} parent=1 // pred_check_branch
      %31 = sbr.rel (0) target = $region17
    $region16: #{tpu_custom_call.1} parent=1 // pred_region
      %32 = dma.done [#allocation5], 1024
    $region17: #{tpu_custom_call.1} parent=1 // pred_fallthru
      _
    %v33 = vld [vmem:[#allocation4] sm:$0xff]
    %v34 = vld [vmem:[#allocation4 + $0x8] sm:$0xff]
    %v35 = vld [vmem:[#allocation4 + $0x10] sm:$0xff]
    %v36 = vld [vmem:[#allocation4 + $0x18] sm:$0xff]
    %37 = vst [vmem:[#allocation2] sm:$0xff] %v33
    %38 = vst [vmem:[#allocation2 + $0x10] sm:$0xff] %v34
    %39 = vst [vmem:[#allocation2 + $0x20] sm:$0xff] %v35
    %40 = vst [vmem:[#allocation2 + $0x30] sm:$0xff] %v36
    %s41 = scalar_lea.vmem [#allocation4], 32
    %v42 = vld [vmem:[%s41] sm:$0xff]
    %v43 = vld [vmem:[%s41 + $0x8] sm:$0xff]
    %v44 = vld [vmem:[%s41 + $0x10] sm:$0xff]
    %v45 = vld [vmem:[%s41 + $0x18] sm:$0xff]
    %46 = vst [vmem:[#allocation2 + $0x8] sm:$0xff] %v42
    %47 = vst [vmem:[#allocation2 + $0x18] sm:$0xff] %v43
    %48 = vst [vmem:[#allocation2 + $0x28] sm:$0xff] %v44
    %49 = vst [vmem:[#allocation2 + $0x38] sm:$0xff] %v45
    %v50 = vld [vmem:[%s1] sm:$0xff]
    %v51 = vld [vmem:[%s1 + $0x8] sm:$0xff]
    %v52 = vld [vmem:[#allocation2] sm:$0xff]
    %v53 = vld [vmem:[#allocation2 + $0x8] sm:$0xff]
    %v54 = vld [vmem:[#allocation2 + $0x10] sm:$0xff]
    %v55 = vld [vmem:[#allocation2 + $0x18] sm:$0xff]
    %v56 = vld [vmem:[#allocation2 + $0x20] sm:$0xff]
    %v57 = vld [vmem:[#allocation2 + $0x28] sm:$0xff]
    %v58 = vld [vmem:[#allocation2 + $0x30] sm:$0xff]
    %v59 = vld [vmem:[#allocation2 + $0x38] sm:$0xff]
    %v60 = vld [vmem:[%s2] sm:$0xff]
    %v61 = vld [vmem:[%s2 + $0x8] sm:$0xff]
    %63 = vset.pattern.permute.xlu0 0
    %64 = vperm.xlu0 %63, %v60
    %v65 = vpop.permute.xlu0 %64
    %68 = vset.pattern.permute.xlu0 0
    %69 = vperm.xlu0 %68, %v61
    %v70 = vpop.permute.xlu0 %69
    %vm72 = vcmask 261120
    %v74 = vsel %vm72, %v50, 0
    %v77 = vsel %vm72, %v51, 0
    %79 = vmatprep.subr.mxu0 0.0
    %80 = vmatpush1.msra.mxu0 0.0
    %81 = vmatprep.subr.mxu0 0.0
    %82 = vmatpush1.msra.mxu0 0.0
    %83 = vmatprep.subr.mxu0 0.0
    %84 = vmatpush1.msra.mxu0 0.0
    %85 = vmatprep.subr.mxu0 0.0
    %86 = vmatpush1.msra.mxu0 0.0
    %87 = vmatprep.subr.mxu0 0.0
    %88 = vmatpush1.msra.mxu0 0.0
    %89 = vmatprep.subr.mxu0 0.0
    %90 = vmatpush1.msra.mxu0 0.0
    %91 = vmatprep.subr.mxu0 0.0
    %92 = vmatpush1.msra.mxu0 0.0
    %93 = vmatprep.subr.mxu0 0.0
    %94 = vmatpush1.msra.mxu0 0.0
    %95 = vmatprep.subr.mxu0 0.0
    %96 = vmatpush1.msra.mxu0 0.0
    %97 = vmatprep.subr.mxu0 0.0
    %98 = vmatpush1.msra.mxu0 0.0
    %99 = vmatprep.subr.mxu0 0.0
    %100 = vmatpush1.msra.mxu0 0.0
    %101 = vmatprep.subr.mxu0 0.0
    %102 = vmatpush1.msra.mxu0 0.0
    %103 = vmatprep.subr.mxu0 %v59
    %104 = vmatpush1.msra.mxu0 %v58
    %105 = vmatprep.subr.mxu0 %v57
    %106 = vmatpush1.msra.mxu0 %v56
    %107 = vmatprep.subr.mxu0 %v55
    %108 = vmatpush1.msra.mxu0 %v54
    %109 = vmatprep.subr.mxu0 %v53
    %110 = vmatpush1.msra.mxu0 %v52
    %111 = vmatprep.subr.mxu0 0.0
    %112 = vmatpush2.msra.mxu0 0.0
    %113 = vmatprep.subr.mxu0 0.0
    %114 = vmatpush2.msra.mxu0 0.0
    %115 = vmatprep.subr.mxu0 0.0
    %116 = vmatpush2.msra.mxu0 0.0
    %117 = vmatprep.subr.mxu0 0.0
    %118 = vmatpush2.msra.mxu0 0.0
    %119 = vmatprep.subr.mxu0 0.0
    %120 = vmatpush2.msra.mxu0 0.0
    %121 = vmatprep.subr.mxu0 0.0
    %122 = vmatpush2.msra.mxu0 0.0
    %123 = vmatprep.subr.mxu0 0.0
    %124 = vmatpush2.msra.mxu0 0.0
    %125 = vmatprep.subr.mxu0 0.0
    %126 = vmatpush2.msra.mxu0 0.0
    %127 = vmatprep.subr.mxu0 0.0
    %128 = vmatpush2.msra.mxu0 0.0
    %129 = vmatprep.subr.mxu0 0.0
    %130 = vmatpush2.msra.mxu0 0.0
    %131 = vmatprep.subr.mxu0 0.0
    %132 = vmatpush2.msra.mxu0 0.0
    %133 = vmatprep.subr.mxu0 0.0
    %134 = vmatpush2.msra.mxu0 0.0
    %135 = vmatprep.subr.mxu0 0.0
    %136 = vmatpush2.msra.mxu0 0.0
    %137 = vmatprep.subr.mxu0 0.0
    %138 = vmatpush2.msra.mxu0 0.0
    %139 = vmatprep.subr.mxu0 0.0
    %140 = vmatpush2.msra.mxu0 0.0
    %141 = vmatprep.subr.mxu0 0.0
    %142 = vmatpush2.msra.mxu0 0.0
    %143 = vmatprep.mubr.f32.mxu0 0.0
    %144 = vmatmul.mubr.f32.gmra.mxu0 %v74
    %v145 = vpop.f32.mrf.mxu0
    %v146 = vadd.f32 %v65, %v145
    %v147 = vpop.f32.mrf.mxu0
    %v148 = vadd.f32 %v65, %v147
    %149 = vmatprep.mubr.f32.mxu0 0.0
    %150 = vmatmul.mubr.f32.gmra.mxu0 %v77
    %v151 = vpop.f32.mrf.mxu0
    %v152 = vadd.f32 %v70, %v151
    %v153 = vpop.f32.mrf.mxu0
    %v154 = vadd.f32 %v70, %v153
    %155 = vdwg.mxu0
    %156 = vst [vmem:[#allocation3] sm:$0xff] %v146
    %157 = vst [vmem:[#allocation3 + $0x8] sm:$0xff] %v152
    %s158 = scalar_lea.vmem [#allocation3], 16
    %159 = vst [vmem:[%s158] sm:$0xff] %v148
    %160 = vst [vmem:[%s158 + $0x8] sm:$0xff] %v154
    %v161 = vld [vmem:[#allocation3] sm:$0xff]
    %v162 = vld [vmem:[#allocation3 + $0x8] sm:$0xff]
    %v163 = vld [vmem:[#allocation3 + $0x10] sm:$0xff]
    %v164 = vld [vmem:[#allocation3 + $0x18] sm:$0xff]
    %v165 = vmax.f32 %v161, -10.0
    %v166 = vmax.f32 %v163, -10.0
    %v167 = vmin.f32 %v165, 10.0
    %v168 = vmin.f32 %v166, 10.0
    %v169 = vmul.f32 %v167, 1.442695
    %v170 = vpow.pop %v169
    %v171 = vmul.f32 %v168, 1.442695
    %v172 = vpow.pop %v171
    %173 = vadd.xlane.f32.xlu0 %v170
    %v174 = vpop.xlane.xlu0 %173
    %175 = vadd.xlane.f32.xlu0 %v172
    %v176 = vpop.xlane.xlu0 %175
    %v177 = vrcp.pop %v174
    %v178 = vmul.f32 1.0, %v177
    %v179 = vrcp.pop %v176
    %v180 = vmul.f32 1.0, %v179
    %v181 = vmul.f32 %v170, %v178
    %v182 = vmul.f32 %v172, %v180
    %183 = vst [vmem:[#allocation8] sm:$0xff] %v181
    %184 = vst [vmem:[#allocation8 + $0x8] sm:$0xff] %v182
    %185 = vst [vmem:[#allocation10] sm:$0xff] %v162
    %186 = vst [vmem:[#allocation10 + $0x8] sm:$0xff] %v164
    %v187 = vmul.f32 %v181, %v162
    %v188 = vmul.f32 %v182, %v164
    %189 = vadd.xlane.f32.xlu0 %v187
    %v190 = vpop.xlane.xlu0 %189
    %191 = vadd.xlane.f32.xlu0 %v188
    %v192 = vpop.xlane.xlu0 %191
    %v195 = vlaneseq
    %v196 = vand.u32 %v195, 127
    %v197 = vlaneseq
    %v198 = vshrl.u32 %v197, 7
    %v199 = vsub.s32 %v196, %v198
    %v200 = vrot.slane %v190, %v199
    %v201 = vlaneseq
    %v202 = vshrl.u32 %v201, 7
    %v203 = vsub.s32 %v196, %v202
    %v204 = vrot.slane %v192, %v203
    %vm205 = vcmask 1041409
    %v206 = vsel %vm205, %v204, %v200
    %vm208 = vcmask 58368
    %209 = vst.msk [vmem:[#allocation7] sm:$0x3] %vm208, %v206
    // Predicated region
    $region18: #{tpu_custom_call.1} parent=1 // pred_check
      _
    $region19: #{tpu_custom_call.1} parent=1 // pred_check_branch
      %211 = sbr.rel (0) target = $region21
    $region20: #{tpu_custom_call.1} parent=1 // pred_region
      %s213 = ssub.s32 32, 32
      %214 = vsyncadd [#allocation6], %s213
      %s216 = sshll.u32 [#allocation7], 4
      %s217 = int_to_ptr.vmem [resolvable:$true] %s216
      %219 = dma.vmem_to_hbm [thread:$0]  %s217, 32, %s3, [#allocation6]
    $region21: #{tpu_custom_call.1} parent=1 // pred_fallthru
      _
    // Predicated region
    $region22: #{tpu_custom_call.1} parent=1 // pred_check
      _
    $region23: #{tpu_custom_call.1} parent=1 // pred_check_branch
      %221 = sbr.rel (0) target = $region25
    $region24: #{tpu_custom_call.1} parent=1 // pred_region
      %s223 = ssub.s32 256, 256
      %224 = vsyncadd [#allocation9], %s223
      %s225 = sshll.u32 [#allocation8], 4
      %s226 = int_to_ptr.vmem [resolvable:$true] %s225
      %231 = dma.vmem_to_hbm [thread:$0]  %s226, 256, %s4, [#allocation9], 128, 128, 8
    $region25: #{tpu_custom_call.1} parent=1 // pred_fallthru
      _
    // Predicated region
    $region26: #{tpu_custom_call.1} parent=1 // pred_check
      _
    $region27: #{tpu_custom_call.1} parent=1 // pred_check_branch
      %233 = sbr.rel (0) target = $region29
    $region28: #{tpu_custom_call.1} parent=1 // pred_region
      %s235 = ssub.s32 256, 256
      %236 = vsyncadd [#allocation9], %s235
      %s237 = sshll.u32 [#allocation10], 4
      %s238 = int_to_ptr.vmem [resolvable:$true] %s237
      %243 = dma.vmem_to_hbm [thread:$0]  %s238, 256, %s5, [#allocation9], 128, 128, 8
    $region29: #{tpu_custom_call.1} parent=1 // pred_fallthru
      _
    // Predicated region
    $region30: #{tpu_custom_call.1} parent=1 // pred_check
      _
    $region31: #{tpu_custom_call.1} parent=1 // pred_check_branch
      %245 = sbr.rel (0) target = $region33
    $region32: #{tpu_custom_call.1} parent=1 // pred_region
      %246 = dma.done [#allocation6], 32
    $region33: #{tpu_custom_call.1} parent=1 // pred_fallthru
      _
    // Predicated region
    $region34: #{tpu_custom_call.1} parent=1 // pred_check
      _
    $region35: #{tpu_custom_call.1} parent=1 // pred_check_branch
      %248 = sbr.rel (0) target = $region37
    $region36: #{tpu_custom_call.1} parent=1 // pred_region
      %249 = dma.done [#allocation9], 256
    $region37: #{tpu_custom_call.1} parent=1 // pred_fallthru
      _
    // Predicated region
    $region38: #{tpu_custom_call.1} parent=1 // pred_check
      _
    $region39: #{tpu_custom_call.1} parent=1 // pred_check_branch
      %251 = sbr.rel (0) target = $region41
    $region40: #{tpu_custom_call.1} parent=1 // pred_region
      %252 = dma.done [#allocation9], 256
    $region41: #{tpu_custom_call.1} parent=1 // pred_fallthru
      _
    %253 = vsyncpa [#allocation5], 1
    %254 = vsyncpa [#allocation6], 1
    %255 = vsyncpa [#allocation9], 1

</llo_original>
